<compile_context>
chip_gen: v7x
topology: tpu7x:2x2x1
jax: 0.10.0
libtpu: 0.0.40
codegen_flags: <defaults>
</compile_context>

<pallas_src>
import jax
import jax.numpy as jnp
from jax import lax
from jax.experimental import pallas as pl
from jax.experimental.pallas import tpu as pltpu

_LANE = 128
_SB_TARGET = 8192                      # sublane rows per grid step
_VMEM_LIMIT = 48 * 1024 * 1024         # explicit scoped-VMEM budget (<=48 MiB)


def _ceil_div(a, b):
    return -(-a // b)


def _round_up(v, m):
    return _ceil_div(v, m) * m


def _make_kernel(sb, hw, B, nj, ragged, full_cover):
    def kernel(x_ref, t_ref, o_ref):
        # x_ref : (2, sb, 128)  logits block (one batch, both channels)
        # t_ref : (sb, 128)     target block (same batch)
        # o_ref : (4, 128)      per-(batch, spatial-partition) lane partials
        p = pl.program_id(1)
        j = pl.program_id(2)
        blk = p * nj + j                       # global spatial block index

        @pl.when(j == 0)
        def _():
            o_ref[...] = jnp.zeros_like(o_ref)

        x0 = x_ref[0].astype(jnp.float32)      # (sb, 128)
        x1 = x_ref[1].astype(jnp.float32)
        t = t_ref[...].astype(jnp.float32)
        nt = 1.0 - t

        # 2-class softmax == sigmoid of the logit difference; use the exact
        # tanh identity so the divide goes to the EUP slot (no VALU divide).
        half_tanh = 0.5 * jnp.tanh(0.5 * (x0 - x1))
        p0 = 0.5 + half_tanh
        p1 = 0.5 - half_tanh

        a = p0 * nt               # -> sum(p0 * (1 - t))
        b = p1 * t                # -> sum(p1 * t)
        c = jnp.square(p0 * t)    # -> sum((p0 * t)^2)
        d = jnp.square(p1 * nt)   # -> sum((p1 * (1 - t))^2)

        def _accum(aa, bb, cc, dd):
            # Lane-wise partial sums; output block is VMEM-resident across j,
            # so it is the accumulator (no scratch, no final copy).
            o_ref[0:1, :] += jnp.sum(aa, axis=0, keepdims=True)
            o_ref[1:2, :] += jnp.sum(bb, axis=0, keepdims=True)
            o_ref[2:3, :] += jnp.sum(cc, axis=0, keepdims=True)
            o_ref[3:4, :] += jnp.sum(dd, axis=0, keepdims=True)

        def _accum_plain():
            _accum(a, b, c, d)

        def _accum_masked():
            # Output-side masking: garbage (even NaN/Inf) in the overrun tail
            # never reaches the accumulator.
            row = lax.broadcasted_iota(jnp.int32, (sb, _LANE), 0)
            col = lax.broadcasted_iota(jnp.int32, (sb, _LANE), 1)
            pos = (blk * sb + row) * _LANE + col
            valid = pos < hw
            zero = jnp.zeros((), jnp.float32)
            _accum(jnp.where(valid, a, zero), jnp.where(valid, b, zero),
                   jnp.where(valid, c, zero), jnp.where(valid, d, zero))

        if ragged:
            # Only the last real block contains positions >= hw; mask only it.
            is_last = blk == B - 1
            pl.when(is_last)(_accum_masked)
            if full_cover:
                pl.when(jnp.logical_not(is_last))(_accum_plain)
            else:
                pl.when(jnp.logical_and(blk < B,
                                        jnp.logical_not(is_last)))(_accum_plain)
        else:
            if full_cover:
                _accum_plain()
            else:
                pl.when(blk < B)(_accum_plain)

    return kernel


@jax.jit
def my_loss(logits, target, eps=1e-15):
    """Pallas implementation of MyLoss.forward.

    logits: (N, 2, H, W) NCHW logits.
    target: (N, H, W) labels; pass a narrow dtype (bool/int8/bf16) if you can —
            it is cast to f32 in-kernel, so narrower dtype = less HBM traffic.
    """
    n, ch, h, w = logits.shape
    assert ch == 2, "MyLoss expects exactly 2 channels (dim=1)"
    hw = h * w

    r = _ceil_div(hw, _LANE)          # number of 128-lane rows
    hw_pad = r * _LANE

    xl = logits.reshape(n, 2, hw)     # free reshape
    tg = target.reshape(n, hw)        # free reshape
    if hw_pad != hw:
        # TODO(synk): rare ragged path (HW % 128 != 0) pays one padding copy;
        # padded elements are excluded in-kernel by the pos < hw mask.
        xl = jnp.pad(xl, ((0, 0), (0, 0), (0, hw_pad - hw)))
        tg = jnp.pad(tg, ((0, 0), (0, hw_pad - hw)))
    xl = xl.reshape(n, 2, r, _LANE)
    tg = tg.reshape(n, r, _LANE)

    # Tile / parallel-split selection.
    if r >= 16:
        # Split the spatial axis across 2 partitions so a second TensorCore
        # (v7x) has work even when N == 1; blocks stay 8-sublane aligned.
        P = 2
        sb = min(_SB_TARGET, _round_up(_ceil_div(r, P), 8))
    else:
        P = 1
        sb = r                        # full-extent block (valid for tiny r)

    B = _ceil_div(r, sb)              # spatial blocks actually needed
    nj = _ceil_div(B, P)              # blocks per partition
    full_cover = (P * nj == B)        # no redundant trailing grid slots
    ragged = (B * sb * _LANE) != hw   # last block extends past valid data

    kernel = _make_kernel(sb, hw, B, nj, ragged, full_cover)

    if full_cover:
        x_map = lambda i, p, j: (i, 0, p * nj + j, 0)
        t_map = lambda i, p, j: (i, p * nj + j, 0)
    else:
        # Clamp redundant trailing slots onto the last real block (its start
        # is always in-bounds); the kernel skips their accumulation (blk < B).
        x_map = lambda i, p, j: (i, 0, jnp.minimum(p * nj + j, B - 1), 0)
        t_map = lambda i, p, j: (i, jnp.minimum(p * nj + j, B - 1), 0)

    partials = pl.pallas_call(
        kernel,
        out_shape=jax.ShapeDtypeStruct((n, P, 4, _LANE), jnp.float32),
        grid=(n, P, nj),
        in_specs=[
            pl.BlockSpec((None, 2, sb, _LANE), x_map),
            pl.BlockSpec((None, sb, _LANE), t_map),
        ],
        out_specs=pl.BlockSpec((None, None, 4, _LANE),
                               lambda i, p, j: (i, p, 0, 0)),
        compiler_params=pltpu.CompilerParams(
            dimension_semantics=("parallel", "parallel", "arbitrary"),
            vmem_limit_bytes=_VMEM_LIMIT,
        ),
    )(xl, tg)

    s = jnp.sum(partials, axis=(0, 1, 3))   # (4,) tiny reduction in JAX
    s0, s1, s2, s3 = s[0], s[1], s[2], s[3]
    pos1 = jnp.square(1.0 - (s0 + eps))
    pos2 = jnp.square(1.0 - (s1 + eps))
    pos_loss = (pos1 + pos2) / 2.0
    neg_loss = (s2 + s3) / 2.0
    return (pos_loss + neg_loss) / 2.0


def _reference_loss(logits, target, eps=1e-15):
    """Pure-JAX reference identical to the PyTorch forward."""
    t = target.astype(jnp.float32)
    p = jax.nn.softmax(logits.astype(jnp.float32), axis=1)
    nt = 1.0 - t
    pos1 = jnp.square(1.0 - (jnp.sum(p[:, 0] * nt) + eps))
    pos2 = jnp.square(1.0 - (jnp.sum(p[:, 1] * t) + eps))
    pos_loss = (pos1 + pos2) / 2.0
    neg_loss = (jnp.sum(jnp.square(p[:, 0] * t))
                + jnp.sum(jnp.square(p[:, 1] * nt))) / 2.0
    return (pos_loss + neg_loss) / 2.0


if __name__ == "__main__":
    key = jax.random.PRNGKey(0)
    k1, k2 = jax.random.split(key)

    # Small 2-class segmentation head shapes: NCHW logits, NHW labels.
    N, C, H, W = 2, 2, 16, 16
    logits = jax.random.normal(k1, (N, C, H, W), dtype=jnp.float32)
    # Narrow target dtype (int8): 4x less HBM traffic for the label stream.
    target = jax.random.bernoulli(k2, 0.5, (N, H, W)).astype(jnp.int8)

    loss = jax.block_until_ready(my_loss(logits, target))
    ref = jax.block_until_ready(_reference_loss(logits, target))
    assert jnp.allclose(loss, ref, rtol=1e-4, atol=1e-4), (loss, ref)

    print("KERNEL_OK")
</pallas_src>

<mosaic_0001>
module attributes {stable_mosaic.version = 11 : i64} {
  func.func @kernel(%arg0: i32, %arg1: i32, %arg2: i32, %arg3: memref<1x2x2x128xf32, #tpu.memory_space<vmem>>, %arg4: memref<1x2x128xi8, #tpu.memory_space<vmem>>, %arg5: memref<1x1x4x128xf32, #tpu.memory_space<vmem>>) attributes {dimension_semantics = [#tpu.dimension_semantics<parallel>, #tpu.dimension_semantics<parallel>, #tpu.dimension_semantics<arbitrary>], iteration_bounds = array<i64: 2, 1, 1>, scalar_prefetch = 0 : i64, scratch_operands = 0 : i64, tpu.core_type = #tpu.core_type<tc>, window_params = [{transform_indices = @transform_0, window_bounds = array<i64: 1, 2, 2, 128>}, {transform_indices = @transform_1, window_bounds = array<i64: 1, 2, 128>}, {transform_indices = @transform_2, window_bounds = array<i64: 1, 1, 4, 128>}]} {
    %c0_i32 = arith.constant 0 : i32
    %0 = arith.cmpi eq, %arg2, %c0_i32 : i32
    %1 = arith.extui %0 : i1 to i32
    %c0_i32_0 = arith.constant 0 : i32
    %2 = arith.cmpi ne, %1, %c0_i32_0 : i32
    scf.if %2 {
      %cst_48 = arith.constant 0.000000e+00 : f32
      %60 = vector.broadcast %cst_48 : f32 to vector<4x128xf32>
      %c0_49 = arith.constant 0 : index
      %c0_50 = arith.constant 0 : index
      %c0_51 = arith.constant 0 : index
      %c0_52 = arith.constant 0 : index
      %61 = vector.load %arg5[%c0_49, %c0_50, %c0_51, %c0_52] : memref<1x1x4x128xf32, #tpu.memory_space<vmem>>, vector<1x1x4x128xf32>
      %62 = vector.shape_cast %61 : vector<1x1x4x128xf32> to vector<4x128xf32>
      %63 = vector.shape_cast %60 : vector<4x128xf32> to vector<1x1x4x128xf32>
      tpu.vector_store %arg5[%c0_49, %c0_50, %c0_51, %c0_52], %63 {strides = array<i32>} : memref<1x1x4x128xf32, #tpu.memory_space<vmem>>, vector<1x1x4x128xf32>,
    } else {
    }
    %c0 = arith.constant 0 : index
    %c0_1 = arith.constant 0 : index
    %c0_2 = arith.constant 0 : index
    %c0_3 = arith.constant 0 : index
    %3 = vector.load %arg3[%c0, %c0_1, %c0_2, %c0_3] : memref<1x2x2x128xf32, #tpu.memory_space<vmem>>, vector<1x1x2x128xf32>
    %4 = vector.shape_cast %3 : vector<1x1x2x128xf32> to vector<2x128xf32>
    %c0_4 = arith.constant 0 : index
    %c1 = arith.constant 1 : index
    %c0_5 = arith.constant 0 : index
    %c0_6 = arith.constant 0 : index
    %5 = vector.load %arg3[%c0_4, %c1, %c0_5, %c0_6] : memref<1x2x2x128xf32, #tpu.memory_space<vmem>>, vector<1x1x2x128xf32>
    %6 = vector.shape_cast %5 : vector<1x1x2x128xf32> to vector<2x128xf32>
    %c0_7 = arith.constant 0 : index
    %c0_8 = arith.constant 0 : index
    %c0_9 = arith.constant 0 : index
    %7 = vector.load %arg4[%c0_7, %c0_8, %c0_9] : memref<1x2x128xi8, #tpu.memory_space<vmem>>, vector<1x2x128xi8>
    %8 = vector.shape_cast %7 : vector<1x2x128xi8> to vector<2x128xi8>
    %9 = arith.sitofp %8 : vector<2x128xi8> to vector<2x128xf32>
    %cst = arith.constant 1.000000e+00 : f32
    %10 = vector.broadcast %cst : f32 to vector<2x128xf32>
    %11 = arith.subf %10, %9 : vector<2x128xf32>
    %12 = arith.subf %4, %6 : vector<2x128xf32>
    %cst_10 = arith.constant 5.000000e-01 : f32
    %13 = vector.broadcast %cst_10 : f32 to vector<2x128xf32>
    %14 = arith.mulf %13, %12 : vector<2x128xf32>
    %15 = math.tanh %14 : vector<2x128xf32>
    %cst_11 = arith.constant 5.000000e-01 : f32
    %16 = vector.broadcast %cst_11 : f32 to vector<2x128xf32>
    %17 = arith.mulf %16, %15 : vector<2x128xf32>
    %cst_12 = arith.constant 5.000000e-01 : f32
    %18 = vector.broadcast %cst_12 : f32 to vector<2x128xf32>
    %19 = arith.addf %18, %17 : vector<2x128xf32>
    %cst_13 = arith.constant 5.000000e-01 : f32
    %20 = vector.broadcast %cst_13 : f32 to vector<2x128xf32>
    %21 = arith.subf %20, %17 : vector<2x128xf32>
    %22 = arith.mulf %19, %11 : vector<2x128xf32>
    %23 = arith.mulf %21, %9 : vector<2x128xf32>
    %24 = arith.mulf %19, %9 : vector<2x128xf32>
    %25 = arith.mulf %24, %24 : vector<2x128xf32>
    %26 = arith.mulf %21, %11 : vector<2x128xf32>
    %27 = arith.mulf %26, %26 : vector<2x128xf32>
    %c0_14 = arith.constant 0 : index
    %c0_15 = arith.constant 0 : index
    %c0_16 = arith.constant 0 : index
    %c0_17 = arith.constant 0 : index
    %28 = vector.load %arg5[%c0_14, %c0_15, %c0_16, %c0_17] : memref<1x1x4x128xf32, #tpu.memory_space<vmem>>, vector<1x1x1x128xf32>
    %29 = vector.shape_cast %28 : vector<1x1x1x128xf32> to vector<1x128xf32>
    %cst_18 = arith.constant dense<0.000000e+00> : vector<128xf32>
    %30 = vector.multi_reduction <add>, %22, %cst_18 [0] : vector<2x128xf32> to vector<128xf32>
    %31 = vector.shape_cast %30 : vector<128xf32> to vector<1x128xf32>
    %32 = arith.addf %29, %31 : vector<1x128xf32>
    %c0_19 = arith.constant 0 : index
    %c0_20 = arith.constant 0 : index
    %c0_21 = arith.constant 0 : index
    %c0_22 = arith.constant 0 : index
    %33 = vector.load %arg5[%c0_19, %c0_20, %c0_21, %c0_22] : memref<1x1x4x128xf32, #tpu.memory_space<vmem>>, vector<1x1x1x128xf32>
    %34 = vector.shape_cast %33 : vector<1x1x1x128xf32> to vector<1x128xf32>
    %35 = vector.shape_cast %32 : vector<1x128xf32> to vector<1x1x1x128xf32>
    tpu.vector_store %arg5[%c0_19, %c0_20, %c0_21, %c0_22], %35 {strides = array<i32>} : memref<1x1x4x128xf32, #tpu.memory_space<vmem>>, vector<1x1x1x128xf32>,
    %c0_23 = arith.constant 0 : index
    %c0_24 = arith.constant 0 : index
    %c1_25 = arith.constant 1 : index
    %c0_26 = arith.constant 0 : index
    %36 = vector.load %arg5[%c0_23, %c0_24, %c1_25, %c0_26] : memref<1x1x4x128xf32, #tpu.memory_space<vmem>>, vector<1x1x1x128xf32>
    %37 = vector.shape_cast %36 : vector<1x1x1x128xf32> to vector<1x128xf32>
    %cst_27 = arith.constant dense<0.000000e+00> : vector<128xf32>
    %38 = vector.multi_reduction <add>, %23, %cst_27 [0] : vector<2x128xf32> to vector<128xf32>
    %39 = vector.shape_cast %38 : vector<128xf32> to vector<1x128xf32>
    %40 = arith.addf %37, %39 : vector<1x128xf32>
    %c0_28 = arith.constant 0 : index
    %c0_29 = arith.constant 0 : index
    %c1_30 = arith.constant 1 : index
    %c0_31 = arith.constant 0 : index
    %41 = vector.load %arg5[%c0_28, %c0_29, %c1_30, %c0_31] : memref<1x1x4x128xf32, #tpu.memory_space<vmem>>, vector<1x1x1x128xf32>
    %42 = vector.shape_cast %41 : vector<1x1x1x128xf32> to vector<1x128xf32>
    %43 = vector.shape_cast %40 : vector<1x128xf32> to vector<1x1x1x128xf32>
    tpu.vector_store %arg5[%c0_28, %c0_29, %c1_30, %c0_31], %43 {strides = array<i32>} : memref<1x1x4x128xf32, #tpu.memory_space<vmem>>, vector<1x1x1x128xf32>,
    %c0_32 = arith.constant 0 : index
    %c0_33 = arith.constant 0 : index
    %c2 = arith.constant 2 : index
    %c0_34 = arith.constant 0 : index
    %44 = vector.load %arg5[%c0_32, %c0_33, %c2, %c0_34] : memref<1x1x4x128xf32, #tpu.memory_space<vmem>>, vector<1x1x1x128xf32>
    %45 = vector.shape_cast %44 : vector<1x1x1x128xf32> to vector<1x128xf32>
    %cst_35 = arith.constant dense<0.000000e+00> : vector<128xf32>
    %46 = vector.multi_reduction <add>, %25, %cst_35 [0] : vector<2x128xf32> to vector<128xf32>
    %47 = vector.shape_cast %46 : vector<128xf32> to vector<1x128xf32>
    %48 = arith.addf %45, %47 : vector<1x128xf32>
    %c0_36 = arith.constant 0 : index
    %c0_37 = arith.constant 0 : index
    %c2_38 = arith.constant 2 : index
    %c0_39 = arith.constant 0 : index
    %49 = vector.load %arg5[%c0_36, %c0_37, %c2_38, %c0_39] : memref<1x1x4x128xf32, #tpu.memory_space<vmem>>, vector<1x1x1x128xf32>
    %50 = vector.shape_cast %49 : vector<1x1x1x128xf32> to vector<1x128xf32>
    %51 = vector.shape_cast %48 : vector<1x128xf32> to vector<1x1x1x128xf32>
    tpu.vector_store %arg5[%c0_36, %c0_37, %c2_38, %c0_39], %51 {strides = array<i32>} : memref<1x1x4x128xf32, #tpu.memory_space<vmem>>, vector<1x1x1x128xf32>,
    %c0_40 = arith.constant 0 : index
    %c0_41 = arith.constant 0 : index
    %c3 = arith.constant 3 : index
    %c0_42 = arith.constant 0 : index
    %52 = vector.load %arg5[%c0_40, %c0_41, %c3, %c0_42] : memref<1x1x4x128xf32, #tpu.memory_space<vmem>>, vector<1x1x1x128xf32>
    %53 = vector.shape_cast %52 : vector<1x1x1x128xf32> to vector<1x128xf32>
    %cst_43 = arith.constant dense<0.000000e+00> : vector<128xf32>
    %54 = vector.multi_reduction <add>, %27, %cst_43 [0] : vector<2x128xf32> to vector<128xf32>
    %55 = vector.shape_cast %54 : vector<128xf32> to vector<1x128xf32>
    %56 = arith.addf %53, %55 : vector<1x128xf32>
    %c0_44 = arith.constant 0 : index
    %c0_45 = arith.constant 0 : index
    %c3_46 = arith.constant 3 : index
    %c0_47 = arith.constant 0 : index
    %57 = vector.load %arg5[%c0_44, %c0_45, %c3_46, %c0_47] : memref<1x1x4x128xf32, #tpu.memory_space<vmem>>, vector<1x1x1x128xf32>
    %58 = vector.shape_cast %57 : vector<1x1x1x128xf32> to vector<1x128xf32>
    %59 = vector.shape_cast %56 : vector<1x128xf32> to vector<1x1x1x128xf32>
    tpu.vector_store %arg5[%c0_44, %c0_45, %c3_46, %c0_47], %59 {strides = array<i32>} : memref<1x1x4x128xf32, #tpu.memory_space<vmem>>, vector<1x1x1x128xf32>,
    return
  }
  func.func @transform_0(%arg0: i32, %arg1: i32, %arg2: i32) -> (i32, i32, i32, i32) {
    %c1_i32 = arith.constant 1 : i32
    %0 = arith.muli %arg1, %c1_i32 : i32
    %1 = arith.addi %0, %arg2 : i32
    %c0_i32 = arith.constant 0 : i32
    %c0_i32_0 = arith.constant 0 : i32
    %c0_i32_1 = arith.constant 0 : i32
    return %arg0, %c0_i32, %1, %c0_i32_0 : i32, i32, i32, i32
  }
  func.func @transform_1(%arg0: i32, %arg1: i32, %arg2: i32) -> (i32, i32, i32) {
    %c1_i32 = arith.constant 1 : i32
    %0 = arith.muli %arg1, %c1_i32 : i32
    %1 = arith.addi %0, %arg2 : i32
    %c0_i32 = arith.constant 0 : i32
    %c0_i32_0 = arith.constant 0 : i32
    return %arg0, %1, %c0_i32 : i32, i32, i32
  }
  func.func @transform_2(%arg0: i32, %arg1: i32, %arg2: i32) -> (i32, i32, i32, i32) {
    %c0_i32 = arith.constant 0 : i32
    %c0_i32_0 = arith.constant 0 : i32
    %c0_i32_1 = arith.constant 0 : i32
    return %arg0, %arg1, %c0_i32, %c0_i32_0 : i32, i32, i32, i32
  }
}

</mosaic_0001>

<llo_original>
// kernel: my_loss.1
$region0: #{my_loss.1}
  #allocation0 [shape = 'u32[]', space=smem, size = 0x4, offset = 0x4, fixed_abs, tag = 'smem constant byte address 0x4 - core index']
  #allocation1 [shape = 'u32[144,128]{1,0:T(1,128)}', space=vmem, size = 0x12000, scoped, tag = 'internal scratch']
  %s0 = inlined_call_operand.vmem [shape: f32[2,2,2,128], index: 0, kind: input, shape index: {}]
  %s1 = inlined_call_operand.vmem [shape: s8[2,2,128], index: 1, kind: input, shape index: {}]
  %s2 = inlined_call_operand.vmem [shape: f32[2,1,4,128], index: 2, kind: output, shape index: {}]
  %s3 = sld [smem:[#allocation0]]
  $region45: #{my_loss.1} parent=0
    _
  %s5 = ssub.s32 1, %s3
  %s6 = scalar_select 0, %s5, %s3
  loop: start=0, step=1, limit=4
  $region2: #{my_loss.1} parent=0 // loop_pre_header
    _
  $region3: #{my_loss.1} parent=0 // loop_header
    %s8 = sphi 0, %s12
    %p9 = scmp.ge.s32.totalorder %s8, 4
    %s15 = sphi 0, %s34
    %s16 = sphi 0, %s30
    %s17 = sphi 0, %s26
    %s18 = sphi 0, %s15
    %s19 = sphi 0, %s16
    %s20 = sphi 0, %s17
    %s21 = sphi 0, %s18
    %s22 = sphi 0, %s19
    %s23 = sphi 0, %s20
    %s41 = sphi 0, %s43
    %s44 = sphi 0, %s41
    %s45 = sphi 0, %s44
    %s61 = sphi 0, %s45
    %s71 = sphi 0, %s73
    %s74 = sphi 0, %s71
    %s75 = sphi 0, %s74
    %s91 = sphi 0, %s75
    %s99 = sphi 0, %s101
    %s102 = sphi 0, %s99
    %s103 = sphi 0, %s102
    %s119 = sphi 0, %s103
  $region4: #{my_loss.1} parent=0 // loop_header_branch
    %11 = sbr.rel (%p9) target = $region8
  $region5: #{my_loss.1} parent=0 // loop_body
    %s13 = ssub.s32 %s8, 1
    %s14 = ssub.s32 %s8, 2
    %s24 = sadd.s32 1, %s17
    %p25 = scmp.ge.s32.totalorder %s24, 1
    %s26 = scalar_select %p25, 0, %s24
    %s27 = sadd.s32 1, %s16
    %s28 = scalar_select %p25, %s27, %s16
    %p29 = scmp.ge.s32.totalorder %s28, 1
    %s30 = scalar_select %p29, 0, %s28
    %s31 = sadd.s32 1, %s15
    %s32 = scalar_select %p29, %s31, %s15
    %p33 = scmp.ge.s32.totalorder %s32, 2
    %s34 = scalar_select %p33, 0, %s32
    %s35 = sadd.s32 %s16, %s17
    %s36 = sadd.s32 %s30, %s26
    %s37 = ssub.s32 %s15, %s34
    %s38 = ssub.s32 %s35, %s36
    %s39 = sor.u32 %s37, %s38
    %p40 = scmp.eq.s32.totalorder %s39, 0
    %s42 = sadd.s32 %s41, 1
    %s43 = scalar_select %p40, %s41, %s42
    %p46 = pneg %p40
    %p47 = scmp.eq.s32.totalorder %s8, 1
    %p48 = por %p46, %p47
    %p49 = scmp.ne.s32.totalorder %s41, %s44
    %p50 = scmp.eq.s32.totalorder %s8, 0
    %p51 = por %p49, %p50
    %p52 = scmp.ne.s32.totalorder %s41, %s44
    %p53 = scmp.eq.s32.totalorder %s13, 1
    %p54 = por %p52, %p53
    %p55 = scmp.ne.s32.totalorder %s44, %s45
    %p56 = scmp.eq.s32.totalorder %s13, 0
    %p57 = por %p55, %p56
    %p58 = scmp.ne.s32.totalorder %s44, %s45
    %p59 = scmp.eq.s32.totalorder %s14, 1
    %p60 = por %p58, %p59
    %p62 = scmp.ne.s32.totalorder %s45, %s61
    %p63 = scmp.eq.s32.totalorder %s14, 0
    %p64 = por %p62, %p63
    %s65 = sadd.s32 %s16, %s17
    %s66 = sadd.s32 %s30, %s26
    %s67 = ssub.s32 %s15, %s34
    %s68 = ssub.s32 %s65, %s66
    %s69 = sor.u32 %s67, %s68
    %p70 = scmp.eq.s32.totalorder %s69, 0
    %s72 = sadd.s32 %s71, 1
    %s73 = scalar_select %p70, %s71, %s72
    %p76 = pneg %p70
    %p77 = scmp.eq.s32.totalorder %s8, 1
    %p78 = por %p76, %p77
    %p79 = scmp.ne.s32.totalorder %s71, %s74
    %p80 = scmp.eq.s32.totalorder %s8, 0
    %p81 = por %p79, %p80
    %p82 = scmp.ne.s32.totalorder %s71, %s74
    %p83 = scmp.eq.s32.totalorder %s13, 1
    %p84 = por %p82, %p83
    %p85 = scmp.ne.s32.totalorder %s74, %s75
    %p86 = scmp.eq.s32.totalorder %s13, 0
    %p87 = por %p85, %p86
    %p88 = scmp.ne.s32.totalorder %s74, %s75
    %p89 = scmp.eq.s32.totalorder %s14, 1
    %p90 = por %p88, %p89
    %p92 = scmp.ne.s32.totalorder %s75, %s91
    %p93 = scmp.eq.s32.totalorder %s14, 0
    %p94 = por %p92, %p93
    %s95 = ssub.s32 %s15, %s34
    %s96 = ssub.s32 %s16, %s30
    %s97 = sor.u32 %s95, %s96
    %p98 = scmp.eq.s32.totalorder %s97, 0
    %s100 = sadd.s32 %s99, 1
    %s101 = scalar_select %p98, %s99, %s100
    %p104 = pneg %p98
    %p105 = scmp.eq.s32.totalorder %s8, 1
    %p106 = por %p104, %p105
    %p107 = scmp.ne.s32.totalorder %s99, %s102
    %p108 = scmp.eq.s32.totalorder %s8, 0
    %p109 = por %p107, %p108
    %p110 = scmp.ne.s32.totalorder %s99, %s102
    %p111 = scmp.eq.s32.totalorder %s13, 1
    %p112 = por %p110, %p111
    %p113 = scmp.ne.s32.totalorder %s102, %s103
    %p114 = scmp.eq.s32.totalorder %s13, 0
    %p115 = por %p113, %p114
    %p116 = scmp.ne.s32.totalorder %s102, %s103
    %p117 = scmp.eq.s32.totalorder %s14, 1
    %p118 = por %p116, %p117
    %p120 = scmp.ne.s32.totalorder %s103, %s119
    %p121 = scmp.eq.s32.totalorder %s14, 0
    %p122 = por %p120, %p121
    %p123 = scmp.le.s32.totalorder 1, %s8
    %p124 = scmp.lt.s32.totalorder %s8, 3
    %p125 = pnand %p123, %p124
    %p126 = pneg %p125
    // Predicated region
    $region9: #{my_loss.1} parent=5 // pred_check
      _
    $region10: #{my_loss.1} parent=5 // pred_check_branch
      %128 = sbr.rel (%p125) target = $region12
    $region11: #{my_loss.1} parent=5 // pred_region
      %s129 = ssub.s32 %s8, 1
    $region12: #{my_loss.1} parent=5 // pred_fallthru
      _
    %p130 = scmp.lt.s32.totalorder %s8, 2
    // Predicated region
    $region13: #{my_loss.1} parent=5 // pred_check
      %p131 = pneg %p130
    $region14: #{my_loss.1} parent=5 // pred_check_branch
      %133 = sbr.rel (%p131) target = $region16
    $region15: #{my_loss.1} parent=5 // pred_region
      // Predicated region
      $region17: #{my_loss.1} parent=15 // pred_check
        %p134 = pneg %p51
      $region18: #{my_loss.1} parent=15 // pred_check_branch
        %136 = sbr.rel (%p134) target = $region20
      $region19: #{my_loss.1} parent=15 // pred_region
        %s137 = sadd.s32 %s16, %s17
        %p138 = scmp.lt.s32.totalorder %s15, 1
        %s139 = scalar_select %p138, %s15, 1
        %p140 = scmp.lt.s32.totalorder %s137, 0
        %s141 = scalar_select %p140, %s137, 0
        %s142 = smul.addr %s139, 2
        %s143 = sadd.s32 %s141, %s142
        %s144 = smul.addr %s143, 2
        %s145 = scalar_lea.vmem %s0, %s144
        %s146 = sadd.s32 %s16, %s17
      $region20: #{my_loss.1} parent=15 // pred_fallthru
        _
      // Predicated region
      $region21: #{my_loss.1} parent=15 // pred_check
        %p147 = pneg %p81
      $region22: #{my_loss.1} parent=15 // pred_check_branch
        %149 = sbr.rel (%p147) target = $region24
      $region23: #{my_loss.1} parent=15 // pred_region
        %s150 = sadd.s32 %s16, %s17
        %p151 = scmp.lt.s32.totalorder %s15, 1
        %s152 = scalar_select %p151, %s15, 1
        %p153 = scmp.lt.s32.totalorder %s150, 0
        %s154 = scalar_select %p153, %s150, 0
        %s155 = sadd.s32 %s154, %s152
        %s156 = scalar_lea.vmem %s1, %s155
        %s157 = sadd.s32 %s16, %s17
      $region24: #{my_loss.1} parent=15 // pred_fallthru
        _
    $region16: #{my_loss.1} parent=5 // pred_fallthru
      _
    %p158 = scmp.le.s32.totalorder 1, %s8
    %p159 = scmp.lt.s32.totalorder %s8, 3
    %p160 = pnand %p158, %p159
    %p161 = pneg %p160
    // Predicated region
    $region25: #{my_loss.1} parent=5 // pred_check
      _
    $region26: #{my_loss.1} parent=5 // pred_check_branch
      %163 = sbr.rel (%p160) target = $region28
    $region27: #{my_loss.1} parent=5 // pred_region
      %s164 = ssub.s32 %s8, 1
      %s165 = sadd.s32 %s19, %s20
      %p166 = scmp.lt.s32.totalorder %s18, 1
      %s167 = scalar_select %p166, %s18, 1
      %p168 = scmp.lt.s32.totalorder %s165, 0
      %s169 = scalar_select %p168, %s165, 0
      %s170 = smul.addr %s167, 2
      %s171 = sadd.s32 %s169, %s170
      %s172 = smul.addr %s171, 2
      %s173 = scalar_lea.vmem %s0, %s172
      %p174 = pneg %p57
      %p175 = pneg %p54
      %s176 = sadd.s32 %s19, %s20
      %p177 = scmp.lt.s32.totalorder %s18, 1
      %s178 = scalar_select %p177, %s18, 1
      %p179 = scmp.lt.s32.totalorder %s176, 0
      %s180 = scalar_select %p179, %s176, 0
      %s181 = sadd.s32 %s180, %s178
      %s182 = scalar_lea.vmem %s1, %s181
      %p183 = pneg %p87
      %p184 = pneg %p84
      %p185 = pneg %p115
      %p186 = pneg %p112
      %p187 = scmp.lt.s32.totalorder %s18, 1
      %s188 = scalar_select %p187, %s18, 1
      %p189 = scmp.lt.s32.totalorder %s19, 0
      %s190 = scalar_select %p189, %s19, 0
      %s191 = sadd.s32 %s190, %s188
      %s192 = smul.addr %s191, 4
      %s193 = scalar_lea.vmem %s2, %s192
      %s194 = sadd.s32 %s19, %s20
      %p195 = scmp.lt.s32.totalorder %s18, 1
      %s196 = scalar_select %p195, %s18, 1
      %p197 = scmp.lt.s32.totalorder %s194, 0
      %s198 = scalar_select %p197, %s194, 0
      %s199 = smul.addr %s196, 2
      %s200 = sadd.s32 %s198, %s199
      %s201 = smul.addr %s200, 2
      %s202 = scalar_lea.vmem %s0, %s201
      %s203 = sadd.s32 %s19, %s20
      %s204 = sadd.s32 %s19, %s20
      %p205 = scmp.lt.s32.totalorder %s18, 1
      %s206 = scalar_select %p205, %s18, 1
      %p207 = scmp.lt.s32.totalorder %s204, 0
      %s208 = scalar_select %p207, %s204, 0
      %s209 = sadd.s32 %s208, %s206
      %s210 = scalar_lea.vmem %s1, %s209
      %s211 = sadd.s32 %s19, %s20
      %p212 = scmp.lt.s32.totalorder %s18, 1
      %s213 = scalar_select %p212, %s18, 1
      %p214 = scmp.lt.s32.totalorder %s19, 0
      %s215 = scalar_select %p214, %s19, 0
      %s216 = sadd.s32 %s215, %s213
      %s217 = smul.addr %s216, 4
      %s218 = scalar_lea.vmem %s2, %s217
      %p219 = scmp.eq.s32.totalorder %s20, 0
      // Predicated region
      $region29: #{my_loss.1} parent=27 // pred_check
        %p220 = pneg %p219
      $region30: #{my_loss.1} parent=27 // pred_check_branch
        %222 = sbr.rel (%p220) target = $region32
      $region31: #{my_loss.1} parent=27 // pred_region
        %223 = vst [vmem:[%s218] sm:$0xf] 0.0
      $region32: #{my_loss.1} parent=27 // pred_fallthru
        _
      %v224 = vld [vmem:[%s202] sm:$0x3]
      %s225 = scalar_lea.vmem %s202, 2
      %v226 = vld [vmem:[%s225] sm:$0x3]
      %v227 = vld [vmem:[%s210] sm:$0x1]
      %v228 = vunpack.c.0.s8 %v227
      %v229 = vcvt.s32.f32 %v228
      %v230 = vsub.f32 1.0, %v229
      %v231 = vsub.f32 %v224, %v226
      %v232 = vmul.f32 %v231, 0.5
      %v233 = vtanh.pop %v232
      %v234 = vmul.f32 %v233, 0.5
      %v235 = vadd.f32 %v234, 0.5
      %v236 = vsub.f32 0.5, %v234
      %v237 = vmul.f32 %v235, %v230
      %v238 = vmul.f32 %v236, %v229
      %v239 = vmul.f32 %v235, %v229
      %v240 = vmul.f32 %v239, %v239
      %v241 = vmul.f32 %v236, %v230
      %v242 = vmul.f32 %v241, %v241
      %v243 = vld [vmem:[%s218] sm:$0x1]
      %vm244 = vcmask 1041408
      %v245 = vsel %vm244, %v237, 0.0
      %v246 = vrot.slane %v245, 4
      %v247 = vadd.f32 %v245, %v246
      %v248 = vrot.slane %v247, 2
      %v249 = vadd.f32 %v247, %v248
      %v250 = vrot.slane %v249, 1
      %v251 = vadd.f32 %v249, %v250
      %v252 = vadd.f32 %v243, %v251
      %253 = vst [vmem:[%s218] sm:$0x1] %v252
      %v254 = vld [vmem:[%s218 + $0x1] sm:$0x1]
      %v255 = vsel %vm244, %v238, 0.0
      %v256 = vrot.slane %v255, 4
      %v257 = vadd.f32 %v255, %v256
      %v258 = vrot.slane %v257, 2
      %v259 = vadd.f32 %v257, %v258
      %v260 = vrot.slane %v259, 1
      %v261 = vadd.f32 %v259, %v260
      %v262 = vadd.f32 %v254, %v261
      %263 = vst [vmem:[%s218 + $0x1] sm:$0x1] %v262
      %v264 = vld [vmem:[%s218 + $0x2] sm:$0x1]
      %v265 = vsel %vm244, %v240, 0.0
      %v266 = vrot.slane %v265, 4
      %v267 = vadd.f32 %v265, %v266
      %v268 = vrot.slane %v267, 2
      %v269 = vadd.f32 %v267, %v268
      %v270 = vrot.slane %v269, 1
      %v271 = vadd.f32 %v269, %v270
      %v272 = vadd.f32 %v264, %v271
      %273 = vst [vmem:[%s218 + $0x2] sm:$0x1] %v272
      %v274 = vld [vmem:[%s218 + $0x3] sm:$0x1]
      %v275 = vsel %vm244, %v242, 0.0
      %v276 = vrot.slane %v275, 4
      %v277 = vadd.f32 %v275, %v276
      %v278 = vrot.slane %v277, 2
      %v279 = vadd.f32 %v277, %v278
      %v280 = vrot.slane %v279, 1
      %v281 = vadd.f32 %v279, %v280
      %v282 = vadd.f32 %v274, %v281
      %283 = vst [vmem:[%s218 + $0x3] sm:$0x1] %v282
      %p284 = scmp.lt.s32.totalorder %s18, 1
      %s285 = scalar_select %p284, %s18, 1
      %p286 = scmp.lt.s32.totalorder %s19, 0
      %s287 = scalar_select %p286, %s19, 0
      %s288 = sadd.s32 %s287, %s285
      %s289 = smul.addr %s288, 4
      %s290 = scalar_lea.vmem %s2, %s289
      // Predicated region
      $region33: #{my_loss.1} parent=27 // pred_check
        %p291 = pneg %p112
      $region34: #{my_loss.1} parent=27 // pred_check_branch
        %293 = sbr.rel (%p291) target = $region36
      $region35: #{my_loss.1} parent=27 // pred_region
        _
      $region36: #{my_loss.1} parent=27 // pred_fallthru
        _
    $region28: #{my_loss.1} parent=5 // pred_fallthru
      _
    %p294 = scmp.le.s32.totalorder 2, %s8
    // Predicated region
    $region37: #{my_loss.1} parent=5 // pred_check
      %p295 = pneg %p294
    $region38: #{my_loss.1} parent=5 // pred_check_branch
      %297 = sbr.rel (%p295) target = $region40
    $region39: #{my_loss.1} parent=5 // pred_region
      %s298 = ssub.s32 %s8, 2
      // Predicated region
      $region41: #{my_loss.1} parent=39 // pred_check
        %p299 = pneg %p118
      $region42: #{my_loss.1} parent=39 // pred_check_branch
        %301 = sbr.rel (%p299) target = $region44
      $region43: #{my_loss.1} parent=39 // pred_region
        %p302 = scmp.lt.s32.totalorder %s21, 1
        %s303 = scalar_select %p302, %s21, 1
        %p304 = scmp.lt.s32.totalorder %s22, 0
        %s305 = scalar_select %p304, %s22, 0
        %s306 = sadd.s32 %s305, %s303
        %s307 = smul.addr %s306, 4
        %s308 = scalar_lea.vmem %s2, %s307
      $region44: #{my_loss.1} parent=39 // pred_fallthru
        _
    $region40: #{my_loss.1} parent=5 // pred_fallthru
      _
  $region6: #{my_loss.1} parent=0 // loop_footer
    %s12 = sadd.s32 1, %s8
  $region7: #{my_loss.1} parent=0 // loop_footer_branch
    %7 = sbr.rel target = $region3
  $region8: #{my_loss.1} parent=0 // loop_exit
    _

</llo_original>
